<compile_context>
chip_gen: v7x
topology: tpu7x:2x2x1
jax: 0.10.0
libtpu: 0.0.40
codegen_flags: <defaults>
</compile_context>

<pallas_src>
import jax
import jax.numpy as jnp
from jax.experimental import pallas as pl
from jax.experimental.pallas import tpu as pltpu

EPS = 1e-6


def _round_up(x, m):
    return ((x + m - 1) // m) * m


def _sublayer_connection_kernel(x_ref, a2_ref, b2_ref, w_ref, b_ref, o_ref):
    # x_ref: (tm, F)   a2/b2/b: (1, F) f32   w: (F, F) bf16   o: (tm, F)
    xf = x_ref[...].astype(jnp.float32)
    n = xf.shape[-1]

    # --- custom LayerNorm (unbiased std, eps added to std), stats in f32 ---
    mean = jnp.mean(xf, axis=-1, keepdims=True)
    diff = xf - mean
    var = jnp.sum(diff * diff, axis=-1, keepdims=True) / (n - 1)
    std = jnp.sqrt(var)
    inv = pl.reciprocal(std + EPS, approx=True)          # EUP slot, ~free
    normed = a2_ref[...] * (diff * inv) + b2_ref[...]

    # --- sublayer: Linear(F -> F), bf16 operands on the MXU, f32 accumulate ---
    y = jnp.dot(normed.astype(jnp.bfloat16), w_ref[...],
                preferred_element_type=jnp.float32) + b_ref[...]

    # --- dropout (eval mode == identity) + residual add ---
    o_ref[...] = (xf + y).astype(o_ref.dtype)


def sublayer_connection(x, a2, b2, w, b, *, tm=256):
    """x: (batch, seq, F). Returns x + Linear(LayerNorm(x)) (dropout = identity)."""
    batch, seq, feat = x.shape
    assert feat >= 2, "unbiased std needs at least 2 features"
    rows = batch * seq

    # Clamp the row tile for small inputs; pad rows so the grid divides evenly.
    tm = min(tm, _round_up(rows, 8))
    rows_p = _round_up(rows, tm)

    x2 = x.reshape(rows, feat)
    if rows_p != rows:
        # zero rows are harmless: diff=0 -> normed=b_2 -> finite y, sliced off below
        x2 = jnp.pad(x2, ((0, rows_p - rows), (0, 0)))

    a2r = a2.reshape(1, feat).astype(jnp.float32)
    b2r = b2.reshape(1, feat).astype(jnp.float32)
    br = b.reshape(1, feat).astype(jnp.float32)
    wbf = w.astype(jnp.bfloat16)                          # bf16 weight for the MXU

    # VMEM budget: double-buffered x tile + out tile + (double-buffered) bf16 W + params.
    in_bytes = 2 * tm * feat * x2.dtype.itemsize
    out_bytes = 2 * tm * feat * x.dtype.itemsize
    w_bytes = 2 * feat * feat * 2
    param_bytes = 8 * feat * 4
    vmem_limit = int(min(max(in_bytes + out_bytes + w_bytes + param_bytes + (8 << 20),
                             32 << 20),
                         112 << 20))

    out = pl.pallas_call(
        _sublayer_connection_kernel,
        out_shape=jax.ShapeDtypeStruct((rows_p, feat), x.dtype),
        grid_spec=pltpu.PrefetchScalarGridSpec(
            num_scalar_prefetch=0,
            grid=(rows_p // tm,),
            in_specs=[
                pl.BlockSpec((tm, feat), lambda i: (i, 0)),    # x rows
                pl.BlockSpec((1, feat), lambda i: (0, 0)),     # a_2 (replicated)
                pl.BlockSpec((1, feat), lambda i: (0, 0)),     # b_2 (replicated)
                pl.BlockSpec((feat, feat), lambda i: (0, 0)),  # W (bf16, grid-invariant)
                pl.BlockSpec((1, feat), lambda i: (0, 0)),     # linear bias
            ],
            out_specs=pl.BlockSpec((tm, feat), lambda i: (i, 0)),
        ),
        compiler_params=pltpu.CompilerParams(
            dimension_semantics=("parallel",),
            vmem_limit_bytes=vmem_limit,
        ),
    )(x2, a2r, b2r, wbf, br)

    if rows_p != rows:
        out = out[:rows]
    return out.reshape(batch, seq, feat)


def _reference(x, a2, b2, w, b):
    n = x.shape[-1]
    mean = jnp.mean(x, axis=-1, keepdims=True)
    diff = x - mean
    var = jnp.sum(diff * diff, axis=-1, keepdims=True) / (n - 1)
    std = jnp.sqrt(var)
    normed = a2 * diff / (std + EPS) + b2
    return x + normed @ w + b


def _run_case(key, batch, seq, feat):
    kx, kw, kb = jax.random.split(key, 3)
    x = jax.random.normal(kx, (batch, seq, feat), dtype=jnp.float32)

    # LayerNorm params exactly as in __init__: a_2 = ones, b_2 = ones
    a2 = jnp.ones((feat,), dtype=jnp.float32)
    b2 = jnp.ones((feat,), dtype=jnp.float32)

    # Deterministic "sublayer" Linear(feat, feat) parameters
    w = jax.random.normal(kw, (feat, feat), dtype=jnp.float32) * 0.02
    b = jax.random.normal(kb, (feat,), dtype=jnp.float32) * 0.02

    out = jax.block_until_ready(sublayer_connection(x, a2, b2, w, b))
    ref = _reference(x, a2, b2, w, b)
    # bf16 matmul path -> loosened tolerance vs. the f32 reference
    assert jnp.allclose(out, ref, atol=3e-2, rtol=3e-2), (
        f"mismatch vs reference at shape ({batch},{seq},{feat})")


if __name__ == "__main__":
    key = jax.random.PRNGKey(0)
    k1, k2 = jax.random.split(key)

    # Small demo shape consistent with the module (batch, seq_len, features)
    _run_case(k1, batch=2, seq=8, feat=32)

    # Lane-dense tiling path: feat multiple of 128, rows//tm > 1
    _run_case(k2, batch=2, seq=256, feat=256)

    print("KERNEL_OK")
</pallas_src>

<mosaic_0001>
module attributes {stable_mosaic.version = 11 : i64} {
  func.func @_sublayer_connection_kernel(%arg0: i32, %arg1: memref<16x32xf32, #tpu.memory_space<vmem>>, %arg2: memref<1x32xf32, #tpu.memory_space<vmem>>, %arg3: memref<1x32xf32, #tpu.memory_space<vmem>>, %arg4: memref<32x32xbf16, #tpu.memory_space<vmem>>, %arg5: memref<1x32xf32, #tpu.memory_space<vmem>>, %arg6: memref<16x32xf32, #tpu.memory_space<vmem>>) attributes {dimension_semantics = [#tpu.dimension_semantics<parallel>], iteration_bounds = array<i64: 1>, scalar_prefetch = 0 : i64, scratch_operands = 0 : i64, tpu.core_type = #tpu.core_type<tc>, window_params = [{transform_indices = @transform_0, window_bounds = array<i64: 16, 32>}, {pipeline_mode = #tpu.pipeline_mode<synchronous>, transform_indices = @transform_1, window_bounds = array<i64: 1, 32>}, {pipeline_mode = #tpu.pipeline_mode<synchronous>, transform_indices = @transform_2, window_bounds = array<i64: 1, 32>}, {pipeline_mode = #tpu.pipeline_mode<synchronous>, transform_indices = @transform_3, window_bounds = array<i64: 32, 32>}, {pipeline_mode = #tpu.pipeline_mode<synchronous>, transform_indices = @transform_4, window_bounds = array<i64: 1, 32>}, {transform_indices = @transform_5, window_bounds = array<i64: 16, 32>}]} {
    %c0 = arith.constant 0 : index
    %c0_0 = arith.constant 0 : index
    %0 = vector.load %arg1[%c0, %c0_0] : memref<16x32xf32, #tpu.memory_space<vmem>>, vector<16x32xf32>
    %cst = arith.constant dense<0.000000e+00> : vector<16xf32>
    %1 = vector.multi_reduction <add>, %0, %cst [1] : vector<16x32xf32> to vector<16xf32>
    %2 = vector.shape_cast %1 : vector<16xf32> to vector<16x1xf32>
    %cst_1 = arith.constant 3.200000e+01 : f32
    %3 = vector.broadcast %cst_1 : f32 to vector<16x1xf32>
    %4 = arith.divf %2, %3 : vector<16x1xf32>
    %5 = vector.broadcast %4 : vector<16x1xf32> to vector<16x32xf32>
    %6 = arith.subf %0, %5 : vector<16x32xf32>
    %7 = arith.mulf %6, %6 : vector<16x32xf32>
    %cst_2 = arith.constant dense<0.000000e+00> : vector<16xf32>
    %8 = vector.multi_reduction <add>, %7, %cst_2 [1] : vector<16x32xf32> to vector<16xf32>
    %9 = vector.shape_cast %8 : vector<16xf32> to vector<16x1xf32>
    %cst_3 = arith.constant 3.100000e+01 : f32
    %10 = vector.broadcast %cst_3 : f32 to vector<16x1xf32>
    %11 = arith.divf %9, %10 : vector<16x1xf32>
    %12 = math.sqrt %11 : vector<16x1xf32>
    %cst_4 = arith.constant 9.99999997E-7 : f32
    %13 = vector.broadcast %cst_4 : f32 to vector<16x1xf32>
    %14 = arith.addf %12, %13 : vector<16x1xf32>
    %15 = tpu.reciprocal %14 {approx = true} : vector<16x1xf32> -> vector<16x1xf32>
    %c0_5 = arith.constant 0 : index
    %c0_6 = arith.constant 0 : index
    %16 = vector.load %arg2[%c0_5, %c0_6] : memref<1x32xf32, #tpu.memory_space<vmem>>, vector<1x32xf32>
    %17 = vector.broadcast %15 : vector<16x1xf32> to vector<16x32xf32>
    %18 = arith.mulf %6, %17 : vector<16x32xf32>
    %19 = vector.broadcast %16 : vector<1x32xf32> to vector<16x32xf32>
    %20 = arith.mulf %19, %18 : vector<16x32xf32>
    %c0_7 = arith.constant 0 : index
    %c0_8 = arith.constant 0 : index
    %21 = vector.load %arg3[%c0_7, %c0_8] : memref<1x32xf32, #tpu.memory_space<vmem>>, vector<1x32xf32>
    %22 = vector.broadcast %21 : vector<1x32xf32> to vector<16x32xf32>
    %23 = arith.addf %20, %22 : vector<16x32xf32>
    %24 = arith.truncf %23 : vector<16x32xf32> to vector<16x32xbf16>
    %c0_9 = arith.constant 0 : index
    %c0_10 = arith.constant 0 : index
    %25 = vector.load %arg4[%c0_9, %c0_10] : memref<32x32xbf16, #tpu.memory_space<vmem>>, vector<32x32xbf16>
    %cst_11 = arith.constant dense<0.000000e+00> : vector<16x32xf32>
    %26 = tpu.matmul %24, %25, %cst_11 {dimension_numbers = #tpu.dot_dimension_numbers<[1], [0], [0], [1], [0, 0, 1, 1], [], []>} : vector<16x32xbf16>, vector<32x32xbf16>, vector<16x32xf32> -> vector<16x32xf32>
    %c0_12 = arith.constant 0 : index
    %c0_13 = arith.constant 0 : index
    %27 = vector.load %arg5[%c0_12, %c0_13] : memref<1x32xf32, #tpu.memory_space<vmem>>, vector<1x32xf32>
    %28 = vector.broadcast %27 : vector<1x32xf32> to vector<16x32xf32>
    %29 = arith.addf %26, %28 : vector<16x32xf32>
    %30 = arith.addf %0, %29 : vector<16x32xf32>
    %c0_14 = arith.constant 0 : index
    %c0_15 = arith.constant 0 : index
    %31 = vector.load %arg6[%c0_14, %c0_15] : memref<16x32xf32, #tpu.memory_space<vmem>>, vector<16x32xf32>
    tpu.vector_store %arg6[%c0_14, %c0_15], %30 {strides = array<i32>} : memref<16x32xf32, #tpu.memory_space<vmem>>, vector<16x32xf32>,
    return
  }
  func.func @transform_0(%arg0: i32) -> (i32, i32) {
    %c0_i32 = arith.constant 0 : i32
    %c0_i32_0 = arith.constant 0 : i32
    return %arg0, %c0_i32 : i32, i32
  }
  func.func @transform_1(%arg0: i32) -> (i32, i32) {
    %c0_i32 = arith.constant 0 : i32
    %c0_i32_0 = arith.constant 0 : i32
    %c0_i32_1 = arith.constant 0 : i32
    return %c0_i32, %c0_i32_0 : i32, i32
  }
  func.func @transform_2(%arg0: i32) -> (i32, i32) {
    %c0_i32 = arith.constant 0 : i32
    %c0_i32_0 = arith.constant 0 : i32
    %c0_i32_1 = arith.constant 0 : i32
    return %c0_i32, %c0_i32_0 : i32, i32
  }
  func.func @transform_3(%arg0: i32) -> (i32, i32) {
    %c0_i32 = arith.constant 0 : i32
    %c0_i32_0 = arith.constant 0 : i32
    %c0_i32_1 = arith.constant 0 : i32
    return %c0_i32, %c0_i32_0 : i32, i32
  }
  func.func @transform_4(%arg0: i32) -> (i32, i32) {
    %c0_i32 = arith.constant 0 : i32
    %c0_i32_0 = arith.constant 0 : i32
    %c0_i32_1 = arith.constant 0 : i32
    return %c0_i32, %c0_i32_0 : i32, i32
  }
  func.func @transform_5(%arg0: i32) -> (i32, i32) {
    %c0_i32 = arith.constant 0 : i32
    %c0_i32_0 = arith.constant 0 : i32
    return %arg0, %c0_i32 : i32, i32
  }
}

</mosaic_0001>

<llo_original>
// kernel: tpu_custom_call.1
$region0: #{tpu_custom_call.1}
  #allocation0 [shape = 'u32[]', space=smem, size = 0x4, offset = 0x4, fixed_abs, tag = 'smem constant byte address 0x4 - core index']
  #allocation1 [shape = 'u32[144,128]{1,0:T(1,128)}', space=vmem, size = 0x12000, scoped, tag = 'internal scratch']
  %s0 = inlined_call_operand.hbm [shape: f32[16,32], index: 0, kind: input, shape index: {}]
  %s1 = inlined_call_operand.vmem [shape: f32[1,32], index: 1, kind: input, shape index: {}]
  %s2 = inlined_call_operand.vmem [shape: f32[1,32], index: 2, kind: input, shape index: {}]
  %s3 = inlined_call_operand.hbm [shape: bf16[32,32], index: 3, kind: input, shape index: {}]
  %s4 = inlined_call_operand.vmem [shape: f32[1,32], index: 4, kind: input, shape index: {}]
  %s5 = inlined_call_operand.hbm [shape: f32[16,32], index: 5, kind: output, shape index: {}]
  %s6 = sld [smem:[#allocation0]]
  $region38: #{tpu_custom_call.1} parent=0
    _
  %s8 = ssub.s32 1, %s6
  %s9 = scalar_select 0, %s8, %s6
  $region1: #{tpu_custom_call.1} parent=0
    #allocation2 [shape = 'u8[8192]{0}', space=vmem, size = 0x2000, scoped, tag = 'input window, operand 0, single buffered']
    #allocation3 [shape = 's32[1]{0}', space=sflag, size = 0x4, scoped, tag = 'scoped memory for tpu_custom_call.1']
    #allocation4 [shape = 's32[1]{0}', space=sflag, size = 0x4, scoped, tag = 'scoped memory for tpu_custom_call.1']
    #allocation5 [shape = 'u8[8192]{0}', space=vmem, size = 0x2000, scoped, tag = 'input window, operand 3, single buffered']
    #allocation6 [shape = 's32[1]{0}', space=sflag, size = 0x4, scoped, tag = 'scoped memory for tpu_custom_call.1']
    #allocation7 [shape = 'u8[8192]{0}', space=vmem, size = 0x2000, scoped, tag = 'output window, operand 0, single buffered']
    %10 = vsyncpa [#allocation3], 0
    %11 = vsyncpa [#allocation6], 0
    %12 = vsyncpa [#allocation4], 0
    // Predicated region
    $region2: #{tpu_custom_call.1} parent=1 // pred_check
      _
    $region3: #{tpu_custom_call.1} parent=1 // pred_check_branch
      %14 = sbr.rel (0) target = $region5
    $region4: #{tpu_custom_call.1} parent=1 // pred_region
      %s16 = ssub.s32 256, 256
      %17 = vsyncadd [#allocation3], %s16
      %s18 = sshll.u32 [#allocation2], 4
      %s19 = int_to_ptr.vmem [resolvable:$true] %s18
      %24 = dma.hbm_to_vmem [thread:$0]  %s0, 256, %s19, [#allocation3], 128, 128, 8
    $region5: #{tpu_custom_call.1} parent=1 // pred_fallthru
      _
    // Predicated region
    $region6: #{tpu_custom_call.1} parent=1 // pred_check
      _
    $region7: #{tpu_custom_call.1} parent=1 // pred_check_branch
      %26 = sbr.rel (0) target = $region9
    $region8: #{tpu_custom_call.1} parent=1 // pred_region
      _
    $region9: #{tpu_custom_call.1} parent=1 // pred_fallthru
      _
    // Predicated region
    $region10: #{tpu_custom_call.1} parent=1 // pred_check
      _
    $region11: #{tpu_custom_call.1} parent=1 // pred_check_branch
      %28 = sbr.rel (0) target = $region13
    $region12: #{tpu_custom_call.1} parent=1 // pred_region
      _
    $region13: #{tpu_custom_call.1} parent=1 // pred_fallthru
      _
    // Predicated region
    $region14: #{tpu_custom_call.1} parent=1 // pred_check
      _
    $region15: #{tpu_custom_call.1} parent=1 // pred_check_branch
      %30 = sbr.rel (0) target = $region17
    $region16: #{tpu_custom_call.1} parent=1 // pred_region
      %s32 = ssub.s32 256, 256
      %33 = vsyncadd [#allocation6], %s32
      %s34 = sshll.u32 [#allocation5], 4
      %s35 = int_to_ptr.vmem [resolvable:$true] %s34
      %40 = dma.hbm_to_vmem [thread:$0]  %s3, 256, %s35, [#allocation6], 64, 64, 4
    $region17: #{tpu_custom_call.1} parent=1 // pred_fallthru
      _
    // Predicated region
    $region18: #{tpu_custom_call.1} parent=1 // pred_check
      _
    $region19: #{tpu_custom_call.1} parent=1 // pred_check_branch
      %42 = sbr.rel (0) target = $region21
    $region20: #{tpu_custom_call.1} parent=1 // pred_region
      _
    $region21: #{tpu_custom_call.1} parent=1 // pred_fallthru
      _
    // Predicated region
    $region22: #{tpu_custom_call.1} parent=1 // pred_check
      _
    $region23: #{tpu_custom_call.1} parent=1 // pred_check_branch
      %44 = sbr.rel (0) target = $region25
    $region24: #{tpu_custom_call.1} parent=1 // pred_region
      %45 = dma.done [#allocation3], 256
    $region25: #{tpu_custom_call.1} parent=1 // pred_fallthru
      _
    // Predicated region
    $region26: #{tpu_custom_call.1} parent=1 // pred_check
      _
    $region27: #{tpu_custom_call.1} parent=1 // pred_check_branch
      %47 = sbr.rel (0) target = $region29
    $region28: #{tpu_custom_call.1} parent=1 // pred_region
      %48 = dma.done [#allocation6], 256
    $region29: #{tpu_custom_call.1} parent=1 // pred_fallthru
      _
    %v50 = vld [vmem:[#allocation2] sm:$0xff]
    %v51 = vld [vmem:[#allocation2 + $0x8] sm:$0xff]
    %vm52 = vcmask 261120
    %v53 = vsel %vm52, %v50, 0.0
    %54 = vadd.xlane.f32.xlu0 %v53
    %v55 = vpop.xlane.xlu0 %54
    %v56 = vsel %vm52, %v51, 0.0
    %57 = vadd.xlane.f32.xlu0 %v56
    %v58 = vpop.xlane.xlu0 %57
    %v59 = vrcp.pop 32.0
    %v60 = vmul.f32 %v55, %v59
    %v61 = vmul.f32 %v58, %v59
    %v62 = vsub.f32 %v50, %v60
    %v63 = vsub.f32 %v51, %v61
    %v64 = vmul.f32 %v62, %v62
    %v65 = vmul.f32 %v63, %v63
    %v66 = vsel %vm52, %v64, 0.0
    %67 = vadd.xlane.f32.xlu0 %v66
    %v68 = vpop.xlane.xlu0 %67
    %v69 = vsel %vm52, %v65, 0.0
    %70 = vadd.xlane.f32.xlu0 %v69
    %v71 = vpop.xlane.xlu0 %70
    %v72 = vrcp.pop 31.0
    %v73 = vmul.f32 %v68, %v72
    %v74 = vmul.f32 %v71, %v72
    %v75 = vrsqrt.pop %v73
    %v76 = vmul.f32 %v73, %v75
    %vm77 = vcmp.eq.f32.partialorder %v73, inf
    %v78 = vsel %vm77, %v73, %v76
    %vm79 = vcmp.eq.f32.partialorder %v73, 0.0
    %v80 = vand.u32 %v73, 2147483648
    %v81 = vsel %vm79, %v80, %v78
    %v82 = vrsqrt.pop %v74
    %v83 = vmul.f32 %v74, %v82
    %vm84 = vcmp.eq.f32.partialorder %v74, inf
    %v85 = vsel %vm84, %v74, %v83
    %vm86 = vcmp.eq.f32.partialorder %v74, 0.0
    %v87 = vand.u32 %v74, 2147483648
    %v88 = vsel %vm86, %v87, %v85
    %v89 = vadd.f32 %v81, 1e-06
    %v90 = vadd.f32 %v88, 1e-06
    %v91 = vrcp.pop %v89
    %v92 = vrcp.pop %v90
    %v93 = vld [vmem:[%s1] sm:$0x1]
    %v94 = vmul.f32 %v62, %v91
    %v95 = vmul.f32 %v63, %v92
    %v97 = vlaneseq
    %v98 = vshrl.u32 %v97, 7
    %v99 = vsub.s32 0, %v98
    %v100 = vrot.slane %v93, %v99
    %v102 = vmul.f32 %v100, %v94
    %v103 = vmul.f32 %v100, %v95
    %v104 = vld [vmem:[%s2] sm:$0x1]
    %v106 = vlaneseq
    %v107 = vshrl.u32 %v106, 7
    %v108 = vsub.s32 0, %v107
    %v109 = vrot.slane %v104, %v108
    %v111 = vadd.f32 %v102, %v109
    %v112 = vadd.f32 %v103, %v109
    %v113 = vpack.c.bf16 %v112, %v111
    %v114 = vld [vmem:[#allocation5] sm:$0xf]
    %v115 = vld [vmem:[#allocation5 + $0x4] sm:$0xf]
    %v116 = vld [vmem:[#allocation5 + $0x8] sm:$0xf]
    %v117 = vld [vmem:[#allocation5 + $0xc] sm:$0xf]
    %v118 = vld [vmem:[%s4] sm:$0x1]
    %v120 = vlaneseq
    %v121 = vshrl.u32 %v120, 7
    %v122 = vsub.s32 0, %v121
    %v123 = vrot.slane %v118, %v122
    %v129 = vunpack.c.l.b16 %v114
    %v130 = vunpack.c.l.b16 %v115
    %v131 = vunpack.c.l.b16 %v116
    %v132 = vunpack.c.l.b16 %v117
    %v133 = vpack.c.b16 %v130, %v129
    %v134 = vpack.c.b16 %v132, %v131
    %v138 = vsel %vm52, %v113, 0
    %140 = vmatprep.subr.bf16.mxu0 0
    %141 = vmatpush1.bf16.msra.mxu0 %v133
    %142 = vmatprep.subr.bf16.mxu0 0
    %143 = vmatpush1.bf16.msra.mxu0 %v134
    %144 = vmatprep.subr.bf16.mxu0 0
    %145 = vmatpush1.bf16.msra.mxu0 0
    %146 = vmatprep.subr.bf16.mxu0 0
    %147 = vmatpush1.bf16.msra.mxu0 0
    %148 = vmatprep.subr.bf16.mxu0 0
    %149 = vmatpush1.bf16.msra.mxu0 0
    %150 = vmatprep.subr.bf16.mxu0 0
    %151 = vmatpush1.bf16.msra.mxu0 0
    %152 = vmatprep.subr.bf16.mxu0 0
    %153 = vmatpush1.bf16.msra.mxu0 0
    %154 = vmatprep.subr.bf16.mxu0 0
    %155 = vmatpush1.bf16.msra.mxu0 0
    %156 = vmatprep.subr.bf16.mxu0 0
    %157 = vmatpush1.bf16.msra.mxu0 0
    %158 = vmatprep.subr.bf16.mxu0 0
    %159 = vmatpush1.bf16.msra.mxu0 0
    %160 = vmatprep.subr.bf16.mxu0 0
    %161 = vmatpush1.bf16.msra.mxu0 0
    %162 = vmatprep.subr.bf16.mxu0 0
    %163 = vmatpush1.bf16.msra.mxu0 0
    %164 = vmatprep.subr.bf16.mxu0 0
    %165 = vmatpush1.bf16.msra.mxu0 0
    %166 = vmatprep.subr.bf16.mxu0 0
    %167 = vmatpush1.bf16.msra.mxu0 0
    %168 = vmatprep.subr.bf16.mxu0 0
    %169 = vmatpush1.bf16.msra.mxu0 0
    %170 = vmatprep.subr.bf16.mxu0 0
    %171 = vmatpush1.bf16.msra.mxu0 0
    %172 = vmatprep.mubr.bf16.mxu0 0
    %173 = vmatmul.mubr.bf16.gmra.mrb[0].mxu0 %v138
    %v174 = vpop.f32.mrb[0].mxu0
    %v175 = vadd.f32 %v123, %v174
    %v176 = vpop.f32.mrb[0].mxu0
    %v177 = vpop.f32.mrb[0].mxu0
    %v178 = vadd.f32 %v123, %v177
    %v179 = vpop.f32.mrb[0].mxu0
    %180 = vdwg.mxu0
    %v181 = vadd.f32 %v50, %v175
    %v182 = vadd.f32 %v51, %v178
    %183 = vst.msk [vmem:[#allocation7] sm:$0xff] %vm52, %v181
    %184 = vst.msk [vmem:[#allocation7 + $0x8] sm:$0xff] %vm52, %v182
    // Predicated region
    $region30: #{tpu_custom_call.1} parent=1 // pred_check
      _
    $region31: #{tpu_custom_call.1} parent=1 // pred_check_branch
      %186 = sbr.rel (0) target = $region33
    $region32: #{tpu_custom_call.1} parent=1 // pred_region
      %s188 = ssub.s32 256, 256
      %189 = vsyncadd [#allocation4], %s188
      %s190 = sshll.u32 [#allocation7], 4
      %s191 = int_to_ptr.vmem [resolvable:$true] %s190
      %196 = dma.vmem_to_hbm [thread:$0]  %s191, 256, %s5, [#allocation4], 128, 128, 8
    $region33: #{tpu_custom_call.1} parent=1 // pred_fallthru
      _
    // Predicated region
    $region34: #{tpu_custom_call.1} parent=1 // pred_check
      _
    $region35: #{tpu_custom_call.1} parent=1 // pred_check_branch
      %198 = sbr.rel (0) target = $region37
    $region36: #{tpu_custom_call.1} parent=1 // pred_region
      %199 = dma.done [#allocation4], 256
    $region37: #{tpu_custom_call.1} parent=1 // pred_fallthru
      _
    %200 = vsyncpa [#allocation3], 1
    %201 = vsyncpa [#allocation6], 1
    %202 = vsyncpa [#allocation4], 1

</llo_original>
